<compile_context>
chip_gen: v7x
topology: tpu7x:2x2x1
jax: 0.10.0
libtpu: 0.0.40
codegen_flags: <defaults>
</compile_context>

<pallas_src>
import functools

import numpy as np
import jax
import jax.numpy as jnp
from jax import lax
from jax.experimental import pallas as pl
from jax.experimental.pallas import tpu as pltpu


# ---------------------------------------------------------------------------
# Kernel 1: fused Q/K/V projection (the reference forward uses W_q for all
# three).  Runs once per (batch, row-tile); no longer recomputed per q-tile.
# ---------------------------------------------------------------------------
def _proj_kernel(q_ref, k_ref, v_ref, wq_ref, bq_ref, qo_ref, ko_ref, vo_ref):
    f32, bf16 = jnp.float32, jnp.bfloat16
    wq = wq_ref[...]                                    # (d_model, H*d_k) bf16
    bq = bq_ref[...]                                    # (1, H*d_k) f32

    def project(x_ref, o_ref):
        y = jnp.dot(x_ref[0].astype(bf16), wq, preferred_element_type=f32) + bq
        o_ref[0] = y.astype(bf16)

    project(q_ref, qo_ref)
    project(k_ref, ko_ref)
    project(v_ref, vo_ref)


# ---------------------------------------------------------------------------
# Kernel 2: per-(batch, q-tile) attention + output projection.
# ---------------------------------------------------------------------------
def _attn_kernel(q_ref, k_ref, v_ref, mm_ref, wo_ref, bo_ref, *rest,
                 heads, d_k, d_v, seq_len, tq, causal, emit_scores):
    f32, bf16 = jnp.float32, jnp.bfloat16
    if emit_scores:
        out_ref, scores_ref, attn_scratch = rest
    else:
        out_ref, attn_scratch = rest
        scores_ref = None

    inv_scale = float(1.0 / np.sqrt(float(seq_len)))

    # Fold 1/sqrt(L) into q (tq*H*d_k bf16 muls instead of H*tq*L f32 muls).
    qh_all = q_ref[0] * inv_scale            # (tq, H*d_k) bf16 (weak-typed mul)
    kh_all = k_ref[0]                        # (L,  H*d_k) bf16
    vh_all = v_ref[0]                        # (L,  H*d_v) bf16

    # Additive -inf mask bias, computed once per q-tile, shared by all heads.
    mm = mm_ref[0]                           # (1, L) f32 (key positions)
    masked = (mm == 0.0)
    if causal:
        q_start = pl.program_id(1) * tq
        row = lax.broadcasted_iota(jnp.int32, (tq, seq_len), 0) + q_start
        col = lax.broadcasted_iota(jnp.int32, (tq, seq_len), 1)
        masked = masked | (col > row)        # (tq, L)
    bias = jnp.where(masked, -jnp.inf, f32(0.0))

    for h in range(heads):                   # heads is a compile-time constant
        qh = qh_all[:, h * d_k:(h + 1) * d_k]          # (tq, d_k) bf16
        kh = kh_all[:, h * d_k:(h + 1) * d_k]          # (L,  d_k) bf16
        vh = vh_all[:, h * d_v:(h + 1) * d_v]          # (L,  d_v) bf16

        # q @ k^T, contracting last axes (no explicit transpose).
        s = lax.dot_general(qh, kh, (((1,), (1,)), ((), ())),
                            preferred_element_type=f32)          # (tq, L)
        s = s + bias

        # Softmax in f32; the divide goes to the EUP via approx reciprocal.
        m = jnp.max(s, axis=-1, keepdims=True)
        e = jnp.exp(s - m)
        p = e * pl.reciprocal(jnp.sum(e, axis=-1, keepdims=True), approx=True)

        if emit_scores:
            scores_ref[h, 0] = p.astype(bf16)

        # Write each head's (tq, d_v) result into the shared scratch slab
        # (no jnp.concatenate of lane-narrow pieces; bounds live ranges).
        attn_scratch[:, h * d_v:(h + 1) * d_v] = jnp.dot(
            p.astype(bf16), vh, preferred_element_type=f32)

    # One lane-dense output projection over the concatenated heads.
    out = jnp.dot(attn_scratch[...].astype(bf16), wo_ref[...],
                  preferred_element_type=f32)                     # (tq, d_model)
    out_ref[0] = out + bo_ref[...]


# ---------------------------------------------------------------------------
# Tiling helpers.
# ---------------------------------------------------------------------------
def _row_tile(L, cap):
    """Largest power-of-two tile <= cap that divides L (>= 8), else full L."""
    if L <= cap:
        return L
    t = cap
    while t >= 8:
        if L % t == 0:
            return t
        t //= 2
    return L


def _pick_q_tile(L, emit_scores):
    try:
        kind = jax.devices()[0].device_kind.lower()
    except Exception:
        kind = ""
    # v7x has 64 MiB VMEM per TC: cap the q-tile (and thus the probs output
    # block) at 256 rows when the full probability matrix is emitted.
    cap = 256 if ("v7" in kind and emit_scores) else 512
    return _row_tile(L, cap)


# ---------------------------------------------------------------------------
# Wrapper.
# ---------------------------------------------------------------------------
def multi_head_attention(query, key, value, missing_mask, params, heads,
                         mask=None, return_scores=True):
    """Pallas implementation of MultiHeadAttention.forward.

    Returns (attention_out, attention_scores); attention_scores is bf16 with
    shape (heads * batch, L, L) (torch.cat(..., dim=0) ordering), or None when
    return_scores=False.
    """
    wq, bq, wo, bo = params["wq"], params["bq"], params["wo"], params["bo"]
    B, L, d_model = query.shape
    d_k = wq.shape[1] // heads
    d_v = wo.shape[0] // heads
    assert d_k == d_v, "reference forward projects V with W_q, so d_k == d_v"

    f32, bf16 = jnp.float32, jnp.bfloat16
    wq_b = wq.astype(bf16)                         # weights cast once, wrapper-side
    wo_b = wo.astype(bf16)
    bq_2d = bq.reshape(1, heads * d_k).astype(f32)
    bo_2d = bo.reshape(1, d_model).astype(f32)
    mm_keys = jnp.transpose(missing_mask, (0, 2, 1)).astype(f32)   # (B, 1, L)

    vmem_limit = 64 * 1024 * 1024

    # ---- Kernel 1: hoisted Q/K/V projection (once per element) ------------
    tp = _row_tile(L, 512)
    q_proj, k_proj, v_proj = pl.pallas_call(
        _proj_kernel,
        out_shape=tuple(jax.ShapeDtypeStruct((B, L, heads * d_k), bf16)
                        for _ in range(3)),
        grid_spec=pltpu.PrefetchScalarGridSpec(
            num_scalar_prefetch=0,
            grid=(B, L // tp),
            in_specs=[
                pl.BlockSpec((1, tp, d_model), lambda b, r: (b, r, 0)),       # query
                pl.BlockSpec((1, tp, d_model), lambda b, r: (b, r, 0)),       # key
                pl.BlockSpec((1, tp, d_model), lambda b, r: (b, r, 0)),       # value
                pl.BlockSpec((d_model, heads * d_k), lambda b, r: (0, 0)),    # W_q
                pl.BlockSpec((1, heads * d_k), lambda b, r: (0, 0)),          # b_q
            ],
            out_specs=tuple(
                pl.BlockSpec((1, tp, heads * d_k), lambda b, r: (b, r, 0))
                for _ in range(3)),
        ),
        compiler_params=pltpu.CompilerParams(
            dimension_semantics=("parallel", "parallel"),
            vmem_limit_bytes=vmem_limit),
    )(query, key, value, wq_b, bq_2d)

    # ---- Kernel 2: attention over q-tiles ----------------------------------
    tq = _pick_q_tile(L, return_scores)
    n_q = L // tq

    kernel = functools.partial(
        _attn_kernel, heads=heads, d_k=d_k, d_v=d_v, seq_len=L, tq=tq,
        causal=(mask == "decoder"), emit_scores=return_scores)

    in_specs = [
        pl.BlockSpec((1, tq, heads * d_k), lambda b, qi: (b, qi, 0)),   # q proj tile
        pl.BlockSpec((1, L, heads * d_k), lambda b, qi: (b, 0, 0)),     # k proj
        pl.BlockSpec((1, L, heads * d_v), lambda b, qi: (b, 0, 0)),     # v proj
        pl.BlockSpec((1, 1, L), lambda b, qi: (b, 0, 0)),               # key mask
        pl.BlockSpec((heads * d_v, d_model), lambda b, qi: (0, 0)),     # W_o
        pl.BlockSpec((1, d_model), lambda b, qi: (0, 0)),               # b_o
    ]
    out_shapes = [jax.ShapeDtypeStruct((B, L, d_model), f32)]
    out_specs = [pl.BlockSpec((1, tq, d_model), lambda b, qi: (b, qi, 0))]
    if return_scores:
        out_shapes.append(jax.ShapeDtypeStruct((heads, B, L, L), bf16))
        out_specs.append(
            pl.BlockSpec((heads, 1, tq, L), lambda b, qi: (0, b, qi, 0)))

    results = pl.pallas_call(
        kernel,
        out_shape=tuple(out_shapes),
        grid_spec=pltpu.PrefetchScalarGridSpec(
            num_scalar_prefetch=0,
            grid=(B, n_q),
            in_specs=in_specs,
            out_specs=tuple(out_specs),
            scratch_shapes=[pltpu.VMEM((tq, heads * d_v), f32)]),
        compiler_params=pltpu.CompilerParams(
            dimension_semantics=("parallel", "parallel"),
            vmem_limit_bytes=vmem_limit),
    )(q_proj, k_proj, v_proj, mm_keys, wo_b, bo_2d)

    if return_scores:
        out, scores = results
        return out, scores.reshape(heads * B, L, L)
    (out,) = results
    return out, None


# ---------------------------------------------------------------------------
# Pure-JAX f32 transcription of the PyTorch forward (verification only).
# ---------------------------------------------------------------------------
def mha_reference(query, key, value, missing_mask, params, heads, mask=None):
    wq, bq, wo, bo = params["wq"], params["bq"], params["wo"], params["bo"]
    B, L, _ = query.shape

    def proj(x):
        y = x @ wq + bq                                            # (B, L, H*d_k)
        return jnp.concatenate(jnp.split(y, heads, axis=-1), axis=0)  # (H*B, L, d_k)

    Q, K, V = proj(query), proj(key), proj(value)
    scores = jnp.einsum("bld,bmd->blm", Q, K) / np.sqrt(L)
    mm_rep = jnp.transpose(jnp.tile(missing_mask, (heads, 1, L)), (0, 2, 1))
    scores = jnp.where(mm_rep == 0.0, -jnp.inf, scores)
    if mask == "decoder":
        tri = jnp.triu(jnp.ones((L, L)), k=1).astype(bool)
        scores = jnp.where(tri, -jnp.inf, scores)
    p = jax.nn.softmax(scores, axis=-1)
    attn = jnp.einsum("blm,bmd->bld", p, V)
    attn = jnp.concatenate(jnp.split(attn, heads, axis=0), axis=-1)  # (B, L, H*d_k)
    return attn @ wo + bo, p


if __name__ == "__main__":
    # Small shapes: batch=2, seq=8, d_model=32, heads=4, d_k=d_v=8.
    B, L, d_model, heads, d_k = 2, 8, 32, 4, 8
    d_v = d_k  # reference forward projects V with W_q, so d_k == d_v

    root = jax.random.PRNGKey(0)
    kq, kk, kv, kmm, k1, k2, k3, k4 = jax.random.split(root, 8)

    query = jax.random.normal(kq, (B, L, d_model), dtype=jnp.float32)
    key = jax.random.normal(kk, (B, L, d_model), dtype=jnp.float32)
    value = jax.random.normal(kv, (B, L, d_model), dtype=jnp.float32)

    missing_mask = (jax.random.uniform(kmm, (B, L, 1)) > 0.3).astype(jnp.float32)
    missing_mask = missing_mask.at[:, 0, 0].set(1.0)  # keep >=1 valid key per row

    lim_q = 1.0 / np.sqrt(d_model)
    lim_o = 1.0 / np.sqrt(heads * d_v)
    params = {
        "wq": jax.random.uniform(k1, (d_model, heads * d_k), jnp.float32, -lim_q, lim_q),
        "bq": jax.random.uniform(k2, (heads * d_k,), jnp.float32, -lim_q, lim_q),
        "wo": jax.random.uniform(k3, (heads * d_v, d_model), jnp.float32, -lim_o, lim_o),
        "bo": jax.random.uniform(k4, (d_model,), jnp.float32, -lim_o, lim_o),
    }

    # bf16 MXU operands + approx reciprocal + bf16 probs output -> compare
    # against the f32 reference with a correspondingly relaxed tolerance.
    for m in (None, "decoder"):
        out, scores = multi_head_attention(query, key, value, missing_mask,
                                           params, heads, mask=m,
                                           return_scores=True)
        out = jax.block_until_ready(out)
        scores = jax.block_until_ready(scores)
        ref_out, ref_scores = mha_reference(query, key, value, missing_mask,
                                            params, heads, mask=m)
        np.testing.assert_allclose(np.asarray(out), np.asarray(ref_out),
                                   rtol=2e-2, atol=2e-2)
        np.testing.assert_allclose(np.asarray(scores, dtype=np.float32),
                                   np.asarray(ref_scores),
                                   rtol=2e-2, atol=2e-2)

    # Also exercise the probs-free path (no O(L^2) writeback at all).
    out_only, none_scores = multi_head_attention(query, key, value, missing_mask,
                                                 params, heads, mask=None,
                                                 return_scores=False)
    out_only = jax.block_until_ready(out_only)
    ref_out, _ = mha_reference(query, key, value, missing_mask, params, heads,
                               mask=None)
    assert none_scores is None
    np.testing.assert_allclose(np.asarray(out_only), np.asarray(ref_out),
                               rtol=2e-2, atol=2e-2)

    print("KERNEL_OK")
</pallas_src>

<mosaic_0001>
module attributes {stable_mosaic.version = 11 : i64} {
  func.func @_proj_kernel(%arg0: i32, %arg1: i32, %arg2: memref<1x8x32xf32, #tpu.memory_space<vmem>>, %arg3: memref<1x8x32xf32, #tpu.memory_space<vmem>>, %arg4: memref<1x8x32xf32, #tpu.memory_space<vmem>>, %arg5: memref<32x32xbf16, #tpu.memory_space<vmem>>, %arg6: memref<1x32xf32, #tpu.memory_space<vmem>>, %arg7: memref<1x8x32xbf16, #tpu.memory_space<vmem>>, %arg8: memref<1x8x32xbf16, #tpu.memory_space<vmem>>, %arg9: memref<1x8x32xbf16, #tpu.memory_space<vmem>>) attributes {dimension_semantics = [#tpu.dimension_semantics<parallel>, #tpu.dimension_semantics<parallel>], iteration_bounds = array<i64: 2, 1>, scalar_prefetch = 0 : i64, scratch_operands = 0 : i64, tpu.core_type = #tpu.core_type<tc>, window_params = [{transform_indices = @transform_0, window_bounds = array<i64: 1, 8, 32>}, {transform_indices = @transform_1, window_bounds = array<i64: 1, 8, 32>}, {transform_indices = @transform_2, window_bounds = array<i64: 1, 8, 32>}, {pipeline_mode = #tpu.pipeline_mode<synchronous>, transform_indices = @transform_3, window_bounds = array<i64: 32, 32>}, {pipeline_mode = #tpu.pipeline_mode<synchronous>, transform_indices = @transform_4, window_bounds = array<i64: 1, 32>}, {transform_indices = @transform_5, window_bounds = array<i64: 1, 8, 32>}, {transform_indices = @transform_6, window_bounds = array<i64: 1, 8, 32>}, {transform_indices = @transform_7, window_bounds = array<i64: 1, 8, 32>}]} {
    %c0 = arith.constant 0 : index
    %c0_0 = arith.constant 0 : index
    %0 = vector.load %arg5[%c0, %c0_0] : memref<32x32xbf16, #tpu.memory_space<vmem>>, vector<32x32xbf16>
    %c0_1 = arith.constant 0 : index
    %c0_2 = arith.constant 0 : index
    %1 = vector.load %arg6[%c0_1, %c0_2] : memref<1x32xf32, #tpu.memory_space<vmem>>, vector<1x32xf32>
    %c0_3 = arith.constant 0 : index
    %c0_4 = arith.constant 0 : index
    %c0_5 = arith.constant 0 : index
    %2 = vector.load %arg2[%c0_3, %c0_4, %c0_5] : memref<1x8x32xf32, #tpu.memory_space<vmem>>, vector<1x8x32xf32>
    %3 = vector.shape_cast %2 : vector<1x8x32xf32> to vector<8x32xf32>
    %4 = arith.truncf %3 : vector<8x32xf32> to vector<8x32xbf16>
    %cst = arith.constant dense<0.000000e+00> : vector<8x32xf32>
    %5 = tpu.matmul %4, %0, %cst {dimension_numbers = #tpu.dot_dimension_numbers<[1], [0], [0], [1], [0, 0, 1, 1], [], []>} : vector<8x32xbf16>, vector<32x32xbf16>, vector<8x32xf32> -> vector<8x32xf32>
    %6 = vector.broadcast %1 : vector<1x32xf32> to vector<8x32xf32>
    %7 = arith.addf %5, %6 : vector<8x32xf32>
    %8 = arith.truncf %7 : vector<8x32xf32> to vector<8x32xbf16>
    %c0_6 = arith.constant 0 : index
    %c0_7 = arith.constant 0 : index
    %c0_8 = arith.constant 0 : index
    %9 = vector.load %arg7[%c0_6, %c0_7, %c0_8] : memref<1x8x32xbf16, #tpu.memory_space<vmem>>, vector<1x8x32xbf16>
    %10 = vector.shape_cast %9 : vector<1x8x32xbf16> to vector<8x32xbf16>
    %11 = vector.shape_cast %8 : vector<8x32xbf16> to vector<1x8x32xbf16>
    tpu.vector_store %arg7[%c0_6, %c0_7, %c0_8], %11 {strides = array<i32>} : memref<1x8x32xbf16, #tpu.memory_space<vmem>>, vector<1x8x32xbf16>,
    %c0_9 = arith.constant 0 : index
    %c0_10 = arith.constant 0 : index
    %c0_11 = arith.constant 0 : index
    %12 = vector.load %arg3[%c0_9, %c0_10, %c0_11] : memref<1x8x32xf32, #tpu.memory_space<vmem>>, vector<1x8x32xf32>
    %13 = vector.shape_cast %12 : vector<1x8x32xf32> to vector<8x32xf32>
    %14 = arith.truncf %13 : vector<8x32xf32> to vector<8x32xbf16>
    %cst_12 = arith.constant dense<0.000000e+00> : vector<8x32xf32>
    %15 = tpu.matmul %14, %0, %cst_12 {dimension_numbers = #tpu.dot_dimension_numbers<[1], [0], [0], [1], [0, 0, 1, 1], [], []>} : vector<8x32xbf16>, vector<32x32xbf16>, vector<8x32xf32> -> vector<8x32xf32>
    %16 = vector.broadcast %1 : vector<1x32xf32> to vector<8x32xf32>
    %17 = arith.addf %15, %16 : vector<8x32xf32>
    %18 = arith.truncf %17 : vector<8x32xf32> to vector<8x32xbf16>
    %c0_13 = arith.constant 0 : index
    %c0_14 = arith.constant 0 : index
    %c0_15 = arith.constant 0 : index
    %19 = vector.load %arg8[%c0_13, %c0_14, %c0_15] : memref<1x8x32xbf16, #tpu.memory_space<vmem>>, vector<1x8x32xbf16>
    %20 = vector.shape_cast %19 : vector<1x8x32xbf16> to vector<8x32xbf16>
    %21 = vector.shape_cast %18 : vector<8x32xbf16> to vector<1x8x32xbf16>
    tpu.vector_store %arg8[%c0_13, %c0_14, %c0_15], %21 {strides = array<i32>} : memref<1x8x32xbf16, #tpu.memory_space<vmem>>, vector<1x8x32xbf16>,
    %c0_16 = arith.constant 0 : index
    %c0_17 = arith.constant 0 : index
    %c0_18 = arith.constant 0 : index
    %22 = vector.load %arg4[%c0_16, %c0_17, %c0_18] : memref<1x8x32xf32, #tpu.memory_space<vmem>>, vector<1x8x32xf32>
    %23 = vector.shape_cast %22 : vector<1x8x32xf32> to vector<8x32xf32>
    %24 = arith.truncf %23 : vector<8x32xf32> to vector<8x32xbf16>
    %cst_19 = arith.constant dense<0.000000e+00> : vector<8x32xf32>
    %25 = tpu.matmul %24, %0, %cst_19 {dimension_numbers = #tpu.dot_dimension_numbers<[1], [0], [0], [1], [0, 0, 1, 1], [], []>} : vector<8x32xbf16>, vector<32x32xbf16>, vector<8x32xf32> -> vector<8x32xf32>
    %26 = vector.broadcast %1 : vector<1x32xf32> to vector<8x32xf32>
    %27 = arith.addf %25, %26 : vector<8x32xf32>
    %28 = arith.truncf %27 : vector<8x32xf32> to vector<8x32xbf16>
    %c0_20 = arith.constant 0 : index
    %c0_21 = arith.constant 0 : index
    %c0_22 = arith.constant 0 : index
    %29 = vector.load %arg9[%c0_20, %c0_21, %c0_22] : memref<1x8x32xbf16, #tpu.memory_space<vmem>>, vector<1x8x32xbf16>
    %30 = vector.shape_cast %29 : vector<1x8x32xbf16> to vector<8x32xbf16>
    %31 = vector.shape_cast %28 : vector<8x32xbf16> to vector<1x8x32xbf16>
    tpu.vector_store %arg9[%c0_20, %c0_21, %c0_22], %31 {strides = array<i32>} : memref<1x8x32xbf16, #tpu.memory_space<vmem>>, vector<1x8x32xbf16>,
    return
  }
  func.func @transform_0(%arg0: i32, %arg1: i32) -> (i32, i32, i32) {
    %c0_i32 = arith.constant 0 : i32
    %c0_i32_0 = arith.constant 0 : i32
    return %arg0, %arg1, %c0_i32 : i32, i32, i32
  }
  func.func @transform_1(%arg0: i32, %arg1: i32) -> (i32, i32, i32) {
    %c0_i32 = arith.constant 0 : i32
    %c0_i32_0 = arith.constant 0 : i32
    return %arg0, %arg1, %c0_i32 : i32, i32, i32
  }
  func.func @transform_2(%arg0: i32, %arg1: i32) -> (i32, i32, i32) {
    %c0_i32 = arith.constant 0 : i32
    %c0_i32_0 = arith.constant 0 : i32
    return %arg0, %arg1, %c0_i32 : i32, i32, i32
  }
  func.func @transform_3(%arg0: i32, %arg1: i32) -> (i32, i32) {
    %c0_i32 = arith.constant 0 : i32
    %c0_i32_0 = arith.constant 0 : i32
    %c0_i32_1 = arith.constant 0 : i32
    return %c0_i32, %c0_i32_0 : i32, i32
  }
  func.func @transform_4(%arg0: i32, %arg1: i32) -> (i32, i32) {
    %c0_i32 = arith.constant 0 : i32
    %c0_i32_0 = arith.constant 0 : i32
    %c0_i32_1 = arith.constant 0 : i32
    return %c0_i32, %c0_i32_0 : i32, i32
  }
  func.func @transform_5(%arg0: i32, %arg1: i32) -> (i32, i32, i32) {
    %c0_i32 = arith.constant 0 : i32
    %c0_i32_0 = arith.constant 0 : i32
    return %arg0, %arg1, %c0_i32 : i32, i32, i32
  }
  func.func @transform_6(%arg0: i32, %arg1: i32) -> (i32, i32, i32) {
    %c0_i32 = arith.constant 0 : i32
    %c0_i32_0 = arith.constant 0 : i32
    return %arg0, %arg1, %c0_i32 : i32, i32, i32
  }
  func.func @transform_7(%arg0: i32, %arg1: i32) -> (i32, i32, i32) {
    %c0_i32 = arith.constant 0 : i32
    %c0_i32_0 = arith.constant 0 : i32
    return %arg0, %arg1, %c0_i32 : i32, i32, i32
  }
}

</mosaic_0001>

<llo_original>
// kernel: tpu_custom_call.1
$region0: #{tpu_custom_call.1}
  #allocation0 [shape = 'u32[]', space=smem, size = 0x4, offset = 0x4, fixed_abs, tag = 'smem constant byte address 0x4 - core index']
  #allocation1 [shape = 'u32[144,128]{1,0:T(1,128)}', space=vmem, size = 0x12000, scoped, tag = 'internal scratch']
  %s0 = inlined_call_operand.hbm [shape: f32[2,8,32], index: 0, kind: input, shape index: {}]
  %s1 = inlined_call_operand.hbm [shape: f32[2,8,32], index: 1, kind: input, shape index: {}]
  %s2 = inlined_call_operand.hbm [shape: f32[2,8,32], index: 2, kind: input, shape index: {}]
  %s3 = inlined_call_operand.hbm [shape: bf16[32,32], index: 3, kind: input, shape index: {}]
  %s4 = inlined_call_operand.hbm [shape: f32[1,32], index: 4, kind: input, shape index: {}]
  %s5 = inlined_call_operand.hbm [shape: bf16[2,8,32], index: 5, kind: output, shape index: {0}]
  %s6 = inlined_call_operand.hbm [shape: bf16[2,8,32], index: 6, kind: output, shape index: {1}]
  %s7 = inlined_call_operand.hbm [shape: bf16[2,8,32], index: 7, kind: output, shape index: {2}]
  %8 = xla_tuple %s5, %s6, %s7
  %s9 = sld [smem:[#allocation0]]
  $region89: #{tpu_custom_call.1} parent=0
    _
  %s11 = ssub.s32 1, %s9
  %s12 = scalar_select 0, %s11, %s9
  $region1: #{tpu_custom_call.1} parent=0
    #allocation2 [shape = 'u8[8192]{0}', space=vmem, size = 0x2000, scoped, tag = 'input window, operand 0']
    #allocation3 [shape = 's32[2]{0}', space=sflag, size = 0x8, scoped, tag = 'scoped memory for tpu_custom_call.1']
    #allocation4 [shape = 's32[2]{0}', space=sflag, size = 0x8, scoped, tag = 'scoped memory for tpu_custom_call.1']
    #allocation5 [shape = 'u8[8192]{0}', space=vmem, size = 0x2000, scoped, tag = 'input window, operand 1']
    #allocation6 [shape = 's32[2]{0}', space=sflag, size = 0x8, scoped, tag = 'scoped memory for tpu_custom_call.1']
    #allocation7 [shape = 'u8[8192]{0}', space=vmem, size = 0x2000, scoped, tag = 'input window, operand 2']
    #allocation8 [shape = 'u8[8192]{0}', space=vmem, size = 0x2000, scoped, tag = 'input window, operand 3, single buffered']
    #allocation9 [shape = 's32[1]{0}', space=sflag, size = 0x4, scoped, tag = 'scoped memory for tpu_custom_call.1']
    #allocation10 [shape = 'u8[512]{0}', space=vmem, size = 0x400, scoped, tag = 'input window, operand 4, single buffered']
    #allocation11 [shape = 'u8[4096]{0}', space=vmem, size = 0x1000, scoped, tag = 'output window, operand 0']
    #allocation12 [shape = 'u8[4096]{0}', space=vmem, size = 0x1000, scoped, tag = 'output window, operand 1']
    #allocation13 [shape = 's32[2]{0}', space=sflag, size = 0x8, scoped, tag = 'scoped memory for tpu_custom_call.1']
    #allocation14 [shape = 'u8[4096]{0}', space=vmem, size = 0x1000, scoped, tag = 'output window, operand 2']
    %13 = vsyncpa [#allocation3], 0
    %s14 = scalar_lea.sflag [#allocation3], 1
    %15 = vsyncpa %s14, 0
    %16 = vsyncpa [#allocation6], 0
    %s17 = scalar_lea.sflag [#allocation6], 1
    %18 = vsyncpa %s17, 0
    %19 = vsyncpa [#allocation9], 0
    %20 = vsyncpa [#allocation4], 0
    %s21 = scalar_lea.sflag [#allocation4], 1
    %22 = vsyncpa %s21, 0
    %23 = vsyncpa [#allocation13], 0
    %s24 = scalar_lea.sflag [#allocation13], 1
    %25 = vsyncpa %s24, 0
    loop: start=0, step=1, limit=4
    $region2: #{tpu_custom_call.1} parent=1 // loop_pre_header
      _
    $region3: #{tpu_custom_call.1} parent=1 // loop_header
      %s27 = sphi 0, %s31
      %p28 = scmp.ge.s32.totalorder %s27, 4
      %s34 = sphi 0, %s46
      %s35 = sphi 0, %s42
      %s36 = sphi 0, %s34
      %s37 = sphi 0, %s35
      %s38 = sphi 0, %s36
      %s39 = sphi 0, %s37
      %s51 = sphi 0, %s53
      %s54 = sphi 0, %s51
      %s55 = sphi 0, %s54
      %s71 = sphi 0, %s55
      %s79 = sphi 0, %s81
      %s82 = sphi 0, %s79
      %s83 = sphi 0, %s82
      %s99 = sphi 0, %s83
      %s107 = sphi 0, %s109
      %s110 = sphi 0, %s107
      %s111 = sphi 0, %s110
      %s127 = sphi 0, %s111
      %s131 = sphi 0, %s131
      %s133 = sphi 0, %s131
      %s134 = sphi 0, %s133
      %s148 = sphi 0, %s134
      %s152 = sphi 0, %s152
      %s154 = sphi 0, %s152
      %s155 = sphi 0, %s154
      %s169 = sphi 0, %s155
      %s177 = sphi 0, %s179
      %s180 = sphi 0, %s177
      %s181 = sphi 0, %s180
      %s197 = sphi 0, %s181
      %s205 = sphi 0, %s207
      %s208 = sphi 0, %s205
      %s209 = sphi 0, %s208
      %s225 = sphi 0, %s209
      %s233 = sphi 0, %s235
      %s236 = sphi 0, %s233
      %s237 = sphi 0, %s236
      %s253 = sphi 0, %s237
    $region4: #{tpu_custom_call.1} parent=1 // loop_header_branch
      %30 = sbr.rel (%p28) target = $region8
    $region5: #{tpu_custom_call.1} parent=1 // loop_body
      %s32 = ssub.s32 %s27, 1
      %s33 = ssub.s32 %s27, 2
      %s40 = sadd.s32 1, %s35
      %p41 = scmp.ge.s32.totalorder %s40, 1
      %s42 = scalar_select %p41, 0, %s40
      %s43 = sadd.s32 1, %s34
      %s44 = scalar_select %p41, %s43, %s34
      %p45 = scmp.ge.s32.totalorder %s44, 2
      %s46 = scalar_select %p45, 0, %s44
      %s47 = ssub.s32 %s34, %s46
      %s48 = ssub.s32 %s35, %s42
      %s49 = sor.u32 %s47, %s48
      %p50 = scmp.eq.s32.totalorder %s49, 0
      %s52 = sadd.s32 %s51, 1
      %s53 = scalar_select %p50, %s51, %s52
      %p56 = pneg %p50
      %p57 = scmp.eq.s32.totalorder %s27, 1
      %p58 = por %p56, %p57
      %p59 = scmp.ne.s32.totalorder %s51, %s54
      %p60 = scmp.eq.s32.totalorder %s27, 0
      %p61 = por %p59, %p60
      %p62 = scmp.ne.s32.totalorder %s51, %s54
      %p63 = scmp.eq.s32.totalorder %s32, 1
      %p64 = por %p62, %p63
      %p65 = scmp.ne.s32.totalorder %s54, %s55
      %p66 = scmp.eq.s32.totalorder %s32, 0
      %p67 = por %p65, %p66
      %p68 = scmp.ne.s32.totalorder %s54, %s55
      %p69 = scmp.eq.s32.totalorder %s33, 1
      %p70 = por %p68, %p69
      %p72 = scmp.ne.s32.totalorder %s55, %s71
      %p73 = scmp.eq.s32.totalorder %s33, 0
      %p74 = por %p72, %p73
      %s75 = ssub.s32 %s34, %s46
      %s76 = ssub.s32 %s35, %s42
      %s77 = sor.u32 %s75, %s76
      %p78 = scmp.eq.s32.totalorder %s77, 0
      %s80 = sadd.s32 %s79, 1
      %s81 = scalar_select %p78, %s79, %s80
      %p84 = pneg %p78
      %p85 = scmp.eq.s32.totalorder %s27, 1
      %p86 = por %p84, %p85
      %p87 = scmp.ne.s32.totalorder %s79, %s82
      %p88 = scmp.eq.s32.totalorder %s27, 0
      %p89 = por %p87, %p88
      %p90 = scmp.ne.s32.totalorder %s79, %s82
      %p91 = scmp.eq.s32.totalorder %s32, 1
      %p92 = por %p90, %p91
      %p93 = scmp.ne.s32.totalorder %s82, %s83
      %p94 = scmp.eq.s32.totalorder %s32, 0
      %p95 = por %p93, %p94
      %p96 = scmp.ne.s32.totalorder %s82, %s83
      %p97 = scmp.eq.s32.totalorder %s33, 1
      %p98 = por %p96, %p97
      %p100 = scmp.ne.s32.totalorder %s83, %s99
      %p101 = scmp.eq.s32.totalorder %s33, 0
      %p102 = por %p100, %p101
      %s103 = ssub.s32 %s34, %s46
      %s104 = ssub.s32 %s35, %s42
      %s105 = sor.u32 %s103, %s104
      %p106 = scmp.eq.s32.totalorder %s105, 0
      %s108 = sadd.s32 %s107, 1
      %s109 = scalar_select %p106, %s107, %s108
      %p112 = pneg %p106
      %p113 = scmp.eq.s32.totalorder %s27, 1
      %p114 = por %p112, %p113
      %p115 = scmp.ne.s32.totalorder %s107, %s110
      %p116 = scmp.eq.s32.totalorder %s27, 0
      %p117 = por %p115, %p116
      %p118 = scmp.ne.s32.totalorder %s107, %s110
      %p119 = scmp.eq.s32.totalorder %s32, 1
      %p120 = por %p118, %p119
      %p121 = scmp.ne.s32.totalorder %s110, %s111
      %p122 = scmp.eq.s32.totalorder %s32, 0
      %p123 = por %p121, %p122
      %p124 = scmp.ne.s32.totalorder %s110, %s111
      %p125 = scmp.eq.s32.totalorder %s33, 1
      %p126 = por %p124, %p125
      %p128 = scmp.ne.s32.totalorder %s111, %s127
      %p129 = scmp.eq.s32.totalorder %s33, 0
      %p130 = por %p128, %p129
      %s132 = sadd.s32 %s131, 1
      %p135 = scmp.eq.s32.totalorder %s27, 1
      %p136 = scmp.ne.s32.totalorder %s131, %s133
      %p137 = scmp.eq.s32.totalorder %s27, 0
      %p138 = por %p136, %p137
      %p139 = scmp.ne.s32.totalorder %s131, %s133
      %p140 = scmp.eq.s32.totalorder %s32, 1
      %p141 = por %p139, %p140
      %p142 = scmp.ne.s32.totalorder %s133, %s134
      %p143 = scmp.eq.s32.totalorder %s32, 0
      %p144 = por %p142, %p143
      %p145 = scmp.ne.s32.totalorder %s133, %s134
      %p146 = scmp.eq.s32.totalorder %s33, 1
      %p147 = por %p145, %p146
      %p149 = scmp.ne.s32.totalorder %s134, %s148
      %p150 = scmp.eq.s32.totalorder %s33, 0
      %p151 = por %p149, %p150
      %s153 = sadd.s32 %s152, 1
      %p156 = scmp.eq.s32.totalorder %s27, 1
      %p157 = scmp.ne.s32.totalorder %s152, %s154
      %p158 = scmp.eq.s32.totalorder %s27, 0
      %p159 = por %p157, %p158
      %p160 = scmp.ne.s32.totalorder %s152, %s154
      %p161 = scmp.eq.s32.totalorder %s32, 1
      %p162 = por %p160, %p161
      %p163 = scmp.ne.s32.totalorder %s154, %s155
      %p164 = scmp.eq.s32.totalorder %s32, 0
      %p165 = por %p163, %p164
      %p166 = scmp.ne.s32.totalorder %s154, %s155
      %p167 = scmp.eq.s32.totalorder %s33, 1
      %p168 = por %p166, %p167
      %p170 = scmp.ne.s32.totalorder %s155, %s169
      %p171 = scmp.eq.s32.totalorder %s33, 0
      %p172 = por %p170, %p171
      %s173 = ssub.s32 %s34, %s46
      %s174 = ssub.s32 %s35, %s42
      %s175 = sor.u32 %s173, %s174
      %p176 = scmp.eq.s32.totalorder %s175, 0
      %s178 = sadd.s32 %s177, 1
      %s179 = scalar_select %p176, %s177, %s178
      %p182 = pneg %p176
      %p183 = scmp.eq.s32.totalorder %s27, 1
      %p184 = por %p182, %p183
      %p185 = scmp.ne.s32.totalorder %s177, %s180
      %p186 = scmp.eq.s32.totalorder %s27, 0
      %p187 = por %p185, %p186
      %p188 = scmp.ne.s32.totalorder %s177, %s180
      %p189 = scmp.eq.s32.totalorder %s32, 1
      %p190 = por %p188, %p189
      %p191 = scmp.ne.s32.totalorder %s180, %s181
      %p192 = scmp.eq.s32.totalorder %s32, 0
      %p193 = por %p191, %p192
      %p194 = scmp.ne.s32.totalorder %s180, %s181
      %p195 = scmp.eq.s32.totalorder %s33, 1
      %p196 = por %p194, %p195
      %p198 = scmp.ne.s32.totalorder %s181, %s197
      %p199 = scmp.eq.s32.totalorder %s33, 0
      %p200 = por %p198, %p199
      %s201 = ssub.s32 %s34, %s46
      %s202 = ssub.s32 %s35, %s42
      %s203 = sor.u32 %s201, %s202
      %p204 = scmp.eq.s32.totalorder %s203, 0
      %s206 = sadd.s32 %s205, 1
      %s207 = scalar_select %p204, %s205, %s206
      %p210 = pneg %p204
      %p211 = scmp.eq.s32.totalorder %s27, 1
      %p212 = por %p210, %p211
      %p213 = scmp.ne.s32.totalorder %s205, %s208
      %p214 = scmp.eq.s32.totalorder %s27, 0
      %p215 = por %p213, %p214
      %p216 = scmp.ne.s32.totalorder %s205, %s208
      %p217 = scmp.eq.s32.totalorder %s32, 1
      %p218 = por %p216, %p217
      %p219 = scmp.ne.s32.totalorder %s208, %s209
      %p220 = scmp.eq.s32.totalorder %s32, 0
      %p221 = por %p219, %p220
      %p222 = scmp.ne.s32.totalorder %s208, %s209
      %p223 = scmp.eq.s32.totalorder %s33, 1
      %p224 = por %p222, %p223
      %p226 = scmp.ne.s32.totalorder %s209, %s225
      %p227 = scmp.eq.s32.totalorder %s33, 0
      %p228 = por %p226, %p227
      %s229 = ssub.s32 %s34, %s46
      %s230 = ssub.s32 %s35, %s42
      %s231 = sor.u32 %s229, %s230
      %p232 = scmp.eq.s32.totalorder %s231, 0
      %s234 = sadd.s32 %s233, 1
      %s235 = scalar_select %p232, %s233, %s234
      %p238 = pneg %p232
      %p239 = scmp.eq.s32.totalorder %s27, 1
      %p240 = por %p238, %p239
      %p241 = scmp.ne.s32.totalorder %s233, %s236
      %p242 = scmp.eq.s32.totalorder %s27, 0
      %p243 = por %p241, %p242
      %p244 = scmp.ne.s32.totalorder %s233, %s236
      %p245 = scmp.eq.s32.totalorder %s32, 1
      %p246 = por %p244, %p245
      %p247 = scmp.ne.s32.totalorder %s236, %s237
      %p248 = scmp.eq.s32.totalorder %s32, 0
      %p249 = por %p247, %p248
      %p250 = scmp.ne.s32.totalorder %s236, %s237
      %p251 = scmp.eq.s32.totalorder %s33, 1
      %p252 = por %p250, %p251
      %p254 = scmp.ne.s32.totalorder %s237, %s253
      %p255 = scmp.eq.s32.totalorder %s33, 0
      %p256 = por %p254, %p255
      %p257 = scmp.le.s32.totalorder 1, %s27
      %p258 = scmp.lt.s32.totalorder %s27, 3
      %p259 = pnand %p257, %p258
      %p260 = pneg %p259
      // Predicated region
      $region9: #{tpu_custom_call.1} parent=5 // pred_check
        _
      $region10: #{tpu_custom_call.1} parent=5 // pred_check_branch
        %262 = sbr.rel (%p259) target = $region12
      $region11: #{tpu_custom_call.1} parent=5 // pred_region
        %s263 = ssub.s32 %s27, 1
        // Predicated region
        $region13: #{tpu_custom_call.1} parent=11 // pred_check
          %p264 = pneg %p144
        $region14: #{tpu_custom_call.1} parent=11 // pred_check_branch
          %266 = sbr.rel (%p264) target = $region16
        $region15: #{tpu_custom_call.1} parent=11 // pred_region
          %s268 = ssub.s32 256, 256
          %269 = vsyncadd [#allocation9], %s268
          %s270 = sshll.u32 [#allocation8], 4
          %s271 = int_to_ptr.vmem [resolvable:$true] %s270
          %276 = dma.hbm_to_vmem [thread:$0]  %s3, 256, %s271, [#allocation9], 64, 64, 4
        $region16: #{tpu_custom_call.1} parent=11 // pred_fallthru
          _
        // Predicated region
        $region17: #{tpu_custom_call.1} parent=11 // pred_check
          %p277 = pneg %p165
        $region18: #{tpu_custom_call.1} parent=11 // pred_check_branch
          %279 = sbr.rel (%p277) target = $region20
        $region19: #{tpu_custom_call.1} parent=11 // pred_region
          %s281 = ssub.s32 16, 16
          %282 = vsyncadd [#allocation9], %s281
          %s284 = sshll.u32 [#allocation10], 4
          %s285 = int_to_ptr.vmem [resolvable:$true] %s284
          %287 = dma.hbm_to_vmem [thread:$0]  %s4, 16, %s285, [#allocation9]
        $region20: #{tpu_custom_call.1} parent=11 // pred_fallthru
          _
      $region12: #{tpu_custom_call.1} parent=5 // pred_fallthru
        _
      %p288 = scmp.lt.s32.totalorder %s27, 2
      // Predicated region
      $region21: #{tpu_custom_call.1} parent=5 // pred_check
        %p289 = pneg %p288
      $region22: #{tpu_custom_call.1} parent=5 // pred_check_branch
        %291 = sbr.rel (%p289) target = $region24
      $region23: #{tpu_custom_call.1} parent=5 // pred_region
        // Predicated region
        $region25: #{tpu_custom_call.1} parent=23 // pred_check
          %p292 = pneg %p61
        $region26: #{tpu_custom_call.1} parent=23 // pred_check_branch
          %294 = sbr.rel (%p292) target = $region28
        $region27: #{tpu_custom_call.1} parent=23 // pred_region
          %s295 = sand.u32 %s51, 1
          %s296 = scalar_lea.sflag [#allocation3], %s295
          %s297 = sand.u32 %s51, 1
          %s298 = smul.addr %s297, 8
          %s299 = scalar_lea.vmem [#allocation2], %s298
          %s301 = ssub.s32 128, 128
          %302 = vsyncadd %s296, %s301
          %s303 = sadd.s32 %s35, %s34
          %s304 = smul.addr %s303, 128
          %s305 = scalar_lea.hbm %s0, %s304
          %s307 = sshll.u32 %s299, 4
          %s308 = int_to_ptr.vmem [resolvable:$true] %s307
          %310 = dma.hbm_to_vmem [thread:$0]  %s305, 128, %s308, %s296
        $region28: #{tpu_custom_call.1} parent=23 // pred_fallthru
          _
        // Predicated region
        $region29: #{tpu_custom_call.1} parent=23 // pred_check
          %p311 = pneg %p89
        $region30: #{tpu_custom_call.1} parent=23 // pred_check_branch
          %313 = sbr.rel (%p311) target = $region32
        $region31: #{tpu_custom_call.1} parent=23 // pred_region
          %s314 = sand.u32 %s27, 1
          %s315 = scalar_lea.sflag [#allocation6], %s314
          %s316 = sand.u32 %s79, 1
          %s317 = smul.addr %s316, 8
          %s318 = scalar_lea.vmem [#allocation5], %s317
          %s320 = ssub.s32 128, 128
          %321 = vsyncadd %s315, %s320
          %s322 = sadd.s32 %s35, %s34
          %s323 = smul.addr %s322, 128
          %s324 = scalar_lea.hbm %s1, %s323
          %s326 = sshll.u32 %s318, 4
          %s327 = int_to_ptr.vmem [resolvable:$true] %s326
          %329 = dma.hbm_to_vmem [thread:$0]  %s324, 128, %s327, %s315
        $region32: #{tpu_custom_call.1} parent=23 // pred_fallthru
          _
        // Predicated region
        $region33: #{tpu_custom_call.1} parent=23 // pred_check
          %p330 = pneg %p117
        $region34: #{tpu_custom_call.1} parent=23 // pred_check_branch
          %332 = sbr.rel (%p330) target = $region36
        $region35: #{tpu_custom_call.1} parent=23 // pred_region
          %s333 = sand.u32 %s27, 1
          %s334 = scalar_lea.sflag [#allocation6], %s333
          %s335 = sand.u32 %s107, 1
          %s336 = smul.addr %s335, 8
          %s337 = scalar_lea.vmem [#allocation7], %s336
          %s339 = ssub.s32 128, 128
          %340 = vsyncadd %s334, %s339
          %s341 = sadd.s32 %s35, %s34
          %s342 = smul.addr %s341, 128
          %s343 = scalar_lea.hbm %s2, %s342
          %s345 = sshll.u32 %s337, 4
          %s346 = int_to_ptr.vmem [resolvable:$true] %s345
          %348 = dma.hbm_to_vmem [thread:$0]  %s343, 128, %s346, %s334
        $region36: #{tpu_custom_call.1} parent=23 // pred_fallthru
          _
      $region24: #{tpu_custom_call.1} parent=5 // pred_fallthru
        _
      %p349 = scmp.le.s32.totalorder 1, %s27
      %p350 = scmp.lt.s32.totalorder %s27, 3
      %p351 = pnand %p349, %p350
      %p352 = pneg %p351
      // Predicated region
      $region37: #{tpu_custom_call.1} parent=5 // pred_check
        _
      $region38: #{tpu_custom_call.1} parent=5 // pred_check_branch
        %354 = sbr.rel (%p351) target = $region40
      $region39: #{tpu_custom_call.1} parent=5 // pred_region
        %s355 = ssub.s32 %s27, 1
        %s356 = sand.u32 %s54, 1
        %s357 = scalar_lea.sflag [#allocation3], %s356
        %s358 = sand.u32 %s54, 1
        %s359 = smul.addr %s358, 8
        %s360 = scalar_lea.vmem [#allocation2], %s359
        // Predicated region
        $region41: #{tpu_custom_call.1} parent=39 // pred_check
          %p361 = pneg %p67
        $region42: #{tpu_custom_call.1} parent=39 // pred_check_branch
          %363 = sbr.rel (%p361) target = $region44
        $region43: #{tpu_custom_call.1} parent=39 // pred_region
          %364 = dma.done %s357, 128
        $region44: #{tpu_custom_call.1} parent=39 // pred_fallthru
          _
        %s365 = sand.u32 %s32, 1
        %s366 = scalar_lea.sflag [#allocation6], %s365
        %s367 = sand.u32 %s82, 1
        %s368 = smul.addr %s367, 8
        %s369 = scalar_lea.vmem [#allocation5], %s368
        // Predicated region
        $region45: #{tpu_custom_call.1} parent=39 // pred_check
          %p370 = pneg %p95
        $region46: #{tpu_custom_call.1} parent=39 // pred_check_branch
          %372 = sbr.rel (%p370) target = $region48
        $region47: #{tpu_custom_call.1} parent=39 // pred_region
          %373 = dma.done %s366, 128
        $region48: #{tpu_custom_call.1} parent=39 // pred_fallthru
          _
        %s374 = sand.u32 %s32, 1
        %s375 = scalar_lea.sflag [#allocation6], %s374
        %s376 = sand.u32 %s110, 1
        %s377 = smul.addr %s376, 8
        %s378 = scalar_lea.vmem [#allocation7], %s377
        // Predicated region
        $region49: #{tpu_custom_call.1} parent=39 // pred_check
          %p379 = pneg %p123
        $region50: #{tpu_custom_call.1} parent=39 // pred_check_branch
          %381 = sbr.rel (%p379) target = $region52
        $region51: #{tpu_custom_call.1} parent=39 // pred_region
          %382 = dma.done %s375, 128
        $region52: #{tpu_custom_call.1} parent=39 // pred_fallthru
          _
        // Predicated region
        $region53: #{tpu_custom_call.1} parent=39 // pred_check
          %p383 = pneg %p144
        $region54: #{tpu_custom_call.1} parent=39 // pred_check_branch
          %385 = sbr.rel (%p383) target = $region56
        $region55: #{tpu_custom_call.1} parent=39 // pred_region
          %386 = dma.done [#allocation9], 256
        $region56: #{tpu_custom_call.1} parent=39 // pred_fallthru
          _
        // Predicated region
        $region57: #{tpu_custom_call.1} parent=39 // pred_check
          %p387 = pneg %p165
        $region58: #{tpu_custom_call.1} parent=39 // pred_check_branch
          %389 = sbr.rel (%p387) target = $region60
        $region59: #{tpu_custom_call.1} parent=39 // pred_region
          %390 = dma.done [#allocation9], 16
        $region60: #{tpu_custom_call.1} parent=39 // pred_fallthru
          _
        %s391 = sand.u32 %s54, 1
        %s392 = scalar_lea.sflag [#allocation3], %s391
        %s393 = sand.u32 %s54, 1
        %s394 = smul.addr %s393, 8
        %s395 = scalar_lea.vmem [#allocation2], %s394
        %p396 = pneg %p67
        %p397 = pneg %p64
        %s398 = sand.u32 %s32, 1
        %s399 = scalar_lea.sflag [#allocation6], %s398
        %s400 = sand.u32 %s82, 1
        %s401 = smul.addr %s400, 8
        %s402 = scalar_lea.vmem [#allocation5], %s401
        %p403 = pneg %p95
        %p404 = pneg %p92
        %s405 = sand.u32 %s32, 1
        %s406 = scalar_lea.sflag [#allocation6], %s405
        %s407 = sand.u32 %s110, 1
        %s408 = smul.addr %s407, 8
        %s409 = scalar_lea.vmem [#allocation7], %s408
        %p410 = pneg %p123
        %p411 = pneg %p120
        %p412 = pneg %p144
        %p413 = pneg %p141
        %p414 = pneg %p165
        %p415 = pneg %p162
        %p416 = pneg %p193
        %p417 = pneg %p190
        %s418 = sand.u32 %s180, 1
        %s419 = scalar_lea.sflag [#allocation4], %s418
        %s420 = sand.u32 %s180, 1
        %s421 = smul.addr %s420, 4
        %s422 = scalar_lea.vmem [#allocation11], %s421
        %p423 = pneg %p221
        %p424 = pneg %p218
        %s425 = sand.u32 %s32, 1
        %s426 = scalar_lea.sflag [#allocation13], %s425
        %s427 = sand.u32 %s208, 1
        %s428 = smul.addr %s427, 4
        %s429 = scalar_lea.vmem [#allocation12], %s428
        %p430 = pneg %p249
        %p431 = pneg %p246
        %s432 = sand.u32 %s32, 1
        %s433 = scalar_lea.sflag [#allocation13], %s432
        %s434 = sand.u32 %s236, 1
        %s435 = smul.addr %s434, 4
        %s436 = scalar_lea.vmem [#allocation14], %s435
        %v438 = vld [vmem:[#allocation8] sm:$0xf]
        %v439 = vld [vmem:[#allocation8 + $0x4] sm:$0xf]
        %v440 = vld [vmem:[#allocation8 + $0x8] sm:$0xf]
        %v441 = vld [vmem:[#allocation8 + $0xc] sm:$0xf]
        %v442 = vld [vmem:[#allocation10] sm:$0x1]
        %v443 = vld [vmem:[%s360] sm:$0xff]
        %v444 = vpack.c.bf16 %v443, %v443
        %v446 = vlaneseq
        %v447 = vshrl.u32 %v446, 7
        %v448 = vsub.s32 0, %v447
        %v449 = vrot.slane %v442, %v448
        %v455 = vunpack.c.l.b16 %v438
        %v456 = vunpack.c.l.b16 %v439
        %v457 = vunpack.c.l.b16 %v440
        %v458 = vunpack.c.l.b16 %v441
        %v459 = vpack.c.b16 %v456, %v455
        %v460 = vpack.c.b16 %v458, %v457
        %vm463 = vcmask 261120
        %v465 = vsel %vm463, %v444, 0
        %467 = vmatprep.subr.bf16.mxu0 0
        %468 = vmatpush1.bf16.msra.mxu0 %v459
        %469 = vmatprep.subr.bf16.mxu0 0
        %470 = vmatpush1.bf16.msra.mxu0 %v460
        %471 = vmatprep.subr.bf16.mxu0 0
        %472 = vmatpush1.bf16.msra.mxu0 0
        %473 = vmatprep.subr.bf16.mxu0 0
        %474 = vmatpush1.bf16.msra.mxu0 0
        %475 = vmatprep.subr.bf16.mxu0 0
        %476 = vmatpush1.bf16.msra.mxu0 0
        %477 = vmatprep.subr.bf16.mxu0 0
        %478 = vmatpush1.bf16.msra.mxu0 0
        %479 = vmatprep.subr.bf16.mxu0 0
        %480 = vmatpush1.bf16.msra.mxu0 0
        %481 = vmatprep.subr.bf16.mxu0 0
        %482 = vmatpush1.bf16.msra.mxu0 0
        %483 = vmatprep.subr.bf16.mxu0 0
        %484 = vmatpush1.bf16.msra.mxu0 0
        %485 = vmatprep.subr.bf16.mxu0 0
        %486 = vmatpush1.bf16.msra.mxu0 0
        %487 = vmatprep.subr.bf16.mxu0 0
        %488 = vmatpush1.bf16.msra.mxu0 0
        %489 = vmatprep.subr.bf16.mxu0 0
        %490 = vmatpush1.bf16.msra.mxu0 0
        %491 = vmatprep.subr.bf16.mxu0 0
        %492 = vmatpush1.bf16.msra.mxu0 0
        %493 = vmatprep.subr.bf16.mxu0 0
        %494 = vmatpush1.bf16.msra.mxu0 0
        %495 = vmatprep.subr.bf16.mxu0 0
        %496 = vmatpush1.bf16.msra.mxu0 0
        %497 = vmatprep.subr.bf16.mxu0 0
        %498 = vmatpush1.bf16.msra.mxu0 0
        %499 = vmatprep.mubr.bf16.mxu0 0
        %500 = vmatmul.mubr.bf16.gmra.mrb[0].mxu0 %v465
        %v501 = vpop.f32.mrb[0].mxu0
        %v502 = vadd.f32 %v449, %v501
        %v503 = vpop.f32.mrb[0].mxu0
        %v504 = vpop.f32.mrb[0].mxu0
        %v505 = vpop.f32.mrb[0].mxu0
        %506 = vdwg.mxu0
        %v507 = vpack.c.bf16 %v502, %v502
        %vm508 = vcmask 257024
        %509 = vst.msk [vmem:[%s422] sm:$0xf] %vm508, %v507
        %v510 = vld [vmem:[%s369] sm:$0xff]
        %v511 = vpack.c.bf16 %v510, %v510
        %v513 = vsel %vm463, %v511, 0
        %515 = vmatprep.subr.bf16.mxu0 0
        %516 = vmatpush1.bf16.msra.mxu0 %v459
        %517 = vmatprep.subr.bf16.mxu0 0
        %518 = vmatpush1.bf16.msra.mxu0 %v460
        %519 = vmatprep.subr.bf16.mxu0 0
        %520 = vmatpush1.bf16.msra.mxu0 0
        %521 = vmatprep.subr.bf16.mxu0 0
        %522 = vmatpush1.bf16.msra.mxu0 0
        %523 = vmatprep.subr.bf16.mxu0 0
        %524 = vmatpush1.bf16.msra.mxu0 0
        %525 = vmatprep.subr.bf16.mxu0 0
        %526 = vmatpush1.bf16.msra.mxu0 0
        %527 = vmatprep.subr.bf16.mxu0 0
        %528 = vmatpush1.bf16.msra.mxu0 0
        %529 = vmatprep.subr.bf16.mxu0 0
        %530 = vmatpush1.bf16.msra.mxu0 0
        %531 = vmatprep.subr.bf16.mxu0 0
        %532 = vmatpush1.bf16.msra.mxu0 0
        %533 = vmatprep.subr.bf16.mxu0 0
        %534 = vmatpush1.bf16.msra.mxu0 0
        %535 = vmatprep.subr.bf16.mxu0 0
        %536 = vmatpush1.bf16.msra.mxu0 0
        %537 = vmatprep.subr.bf16.mxu0 0
        %538 = vmatpush1.bf16.msra.mxu0 0
        %539 = vmatprep.subr.bf16.mxu0 0
        %540 = vmatpush1.bf16.msra.mxu0 0
        %541 = vmatprep.subr.bf16.mxu0 0
        %542 = vmatpush1.bf16.msra.mxu0 0
        %543 = vmatprep.subr.bf16.mxu0 0
        %544 = vmatpush1.bf16.msra.mxu0 0
        %545 = vmatprep.subr.bf16.mxu0 0
        %546 = vmatpush1.bf16.msra.mxu0 0
        %547 = vmatprep.mubr.bf16.mxu0 0
        %548 = vmatmul.mubr.bf16.gmra.mrb[0].mxu0 %v513
        %v549 = vpop.f32.mrb[0].mxu0
        %v550 = vadd.f32 %v449, %v549
        %v551 = vpop.f32.mrb[0].mxu0
        %v552 = vpop.f32.mrb[0].mxu0
        %v553 = vpop.f32.mrb[0].mxu0
        %554 = vdwg.mxu0
        %v555 = vpack.c.bf16 %v550, %v550
        %556 = vst.msk [vmem:[%s429] sm:$0xf] %vm508, %v555
        %v557 = vld [vmem:[%s378] sm:$0xff]
        %v558 = vpack.c.bf16 %v557, %v557
        %v560 = vsel %vm463, %v558, 0
        %562 = vmatprep.subr.bf16.mxu0 0
        %563 = vmatpush1.bf16.msra.mxu0 %v459
        %564 = vmatprep.subr.bf16.mxu0 0
        %565 = vmatpush1.bf16.msra.mxu0 %v460
        %566 = vmatprep.subr.bf16.mxu0 0
        %567 = vmatpush1.bf16.msra.mxu0 0
        %568 = vmatprep.subr.bf16.mxu0 0
        %569 = vmatpush1.bf16.msra.mxu0 0
        %570 = vmatprep.subr.bf16.mxu0 0
        %571 = vmatpush1.bf16.msra.mxu0 0
        %572 = vmatprep.subr.bf16.mxu0 0
        %573 = vmatpush1.bf16.msra.mxu0 0
        %574 = vmatprep.subr.bf16.mxu0 0
        %575 = vmatpush1.bf16.msra.mxu0 0
        %576 = vmatprep.subr.bf16.mxu0 0
        %577 = vmatpush1.bf16.msra.mxu0 0
        %578 = vmatprep.subr.bf16.mxu0 0
        %579 = vmatpush1.bf16.msra.mxu0 0
        %580 = vmatprep.subr.bf16.mxu0 0
        %581 = vmatpush1.bf16.msra.mxu0 0
        %582 = vmatprep.subr.bf16.mxu0 0
        %583 = vmatpush1.bf16.msra.mxu0 0
        %584 = vmatprep.subr.bf16.mxu0 0
        %585 = vmatpush1.bf16.msra.mxu0 0
        %586 = vmatprep.subr.bf16.mxu0 0
        %587 = vmatpush1.bf16.msra.mxu0 0
        %588 = vmatprep.subr.bf16.mxu0 0
        %589 = vmatpush1.bf16.msra.mxu0 0
        %590 = vmatprep.subr.bf16.mxu0 0
        %591 = vmatpush1.bf16.msra.mxu0 0
        %592 = vmatprep.subr.bf16.mxu0 0
        %593 = vmatpush1.bf16.msra.mxu0 0
        %594 = vmatprep.mubr.bf16.mxu0 0
        %595 = vmatmul.mubr.bf16.gmra.mrb[0].mxu0 %v560
        %v596 = vpop.f32.mrb[0].mxu0
        %v597 = vadd.f32 %v449, %v596
        %v598 = vpop.f32.mrb[0].mxu0
        %v599 = vpop.f32.mrb[0].mxu0
        %v600 = vpop.f32.mrb[0].mxu0
        %601 = vdwg.mxu0
        %v602 = vpack.c.bf16 %v597, %v597
        %603 = vst.msk [vmem:[%s436] sm:$0xf] %vm508, %v602
        %s604 = sand.u32 %s180, 1
        %s605 = scalar_lea.sflag [#allocation4], %s604
        %s606 = sand.u32 %s180, 1
        %s607 = smul.addr %s606, 4
        %s608 = scalar_lea.vmem [#allocation11], %s607
        %s609 = sand.u32 %s32, 1
        %s610 = scalar_lea.sflag [#allocation13], %s609
        %s611 = sand.u32 %s208, 1
        %s612 = smul.addr %s611, 4
        %s613 = scalar_lea.vmem [#allocation12], %s612
        %s614 = sand.u32 %s32, 1
        %s615 = scalar_lea.sflag [#allocation13], %s614
        %s616 = sand.u32 %s236, 1
        %s617 = smul.addr %s616, 4
        %s618 = scalar_lea.vmem [#allocation14], %s617
        // Predicated region
        $region61: #{tpu_custom_call.1} parent=39 // pred_check
          %p619 = pneg %p190
        $region62: #{tpu_custom_call.1} parent=39 // pred_check_branch
          %621 = sbr.rel (%p619) target = $region64
        $region63: #{tpu_custom_call.1} parent=39 // pred_region
          %s623 = ssub.s32 64, 64
          %624 = vsyncadd %s605, %s623
          %s625 = sadd.s32 %s37, %s36
          %s626 = smul.addr %s625, 64
          %s627 = scalar_lea.hbm %s5, %s626
          %s629 = sshll.u32 %s608, 4
          %s630 = int_to_ptr.vmem [resolvable:$true] %s629
          %632 = dma.vmem_to_hbm [thread:$0]  %s630, 64, %s627, %s605
        $region64: #{tpu_custom_call.1} parent=39 // pred_fallthru
          _
        // Predicated region
        $region65: #{tpu_custom_call.1} parent=39 // pred_check
          %p633 = pneg %p218
        $region66: #{tpu_custom_call.1} parent=39 // pred_check_branch
          %635 = sbr.rel (%p633) target = $region68
        $region67: #{tpu_custom_call.1} parent=39 // pred_region
          %s637 = ssub.s32 64, 64
          %638 = vsyncadd %s610, %s637
          %s639 = sadd.s32 %s37, %s36
          %s640 = smul.addr %s639, 64
          %s641 = scalar_lea.hbm %s6, %s640
          %s643 = sshll.u32 %s613, 4
          %s644 = int_to_ptr.vmem [resolvable:$true] %s643
          %646 = dma.vmem_to_hbm [thread:$0]  %s644, 64, %s641, %s610
        $region68: #{tpu_custom_call.1} parent=39 // pred_fallthru
          _
        // Predicated region
        $region69: #{tpu_custom_call.1} parent=39 // pred_check
          %p647 = pneg %p246
        $region70: #{tpu_custom_call.1} parent=39 // pred_check_branch
          %649 = sbr.rel (%p647) target = $region72
        $region71: #{tpu_custom_call.1} parent=39 // pred_region
          %s651 = ssub.s32 64, 64
          %652 = vsyncadd %s615, %s651
          %s653 = sadd.s32 %s37, %s36
          %s654 = smul.addr %s653, 64
          %s655 = scalar_lea.hbm %s7, %s654
          %s657 = sshll.u32 %s618, 4
          %s658 = int_to_ptr.vmem [resolvable:$true] %s657
          %660 = dma.vmem_to_hbm [thread:$0]  %s658, 64, %s655, %s615
        $region72: #{tpu_custom_call.1} parent=39 // pred_fallthru
          _
      $region40: #{tpu_custom_call.1} parent=5 // pred_fallthru
        _
      %p661 = scmp.le.s32.totalorder 2, %s27
      // Predicated region
      $region73: #{tpu_custom_call.1} parent=5 // pred_check
        %p662 = pneg %p661
      $region74: #{tpu_custom_call.1} parent=5 // pred_check_branch
        %664 = sbr.rel (%p662) target = $region76
      $region75: #{tpu_custom_call.1} parent=5 // pred_region
        %s665 = ssub.s32 %s27, 2
        // Predicated region
        $region77: #{tpu_custom_call.1} parent=75 // pred_check
          %p666 = pneg %p196
        $region78: #{tpu_custom_call.1} parent=75 // pred_check_branch
          %668 = sbr.rel (%p666) target = $region80
        $region79: #{tpu_custom_call.1} parent=75 // pred_region
          %s669 = sand.u32 %s181, 1
          %s670 = scalar_lea.sflag [#allocation4], %s669
          %s671 = sand.u32 %s181, 1
          %s672 = smul.addr %s671, 4
          %s673 = scalar_lea.vmem [#allocation11], %s672
          %674 = dma.done %s670, 64
        $region80: #{tpu_custom_call.1} parent=75 // pred_fallthru
          _
        // Predicated region
        $region81: #{tpu_custom_call.1} parent=75 // pred_check
          %p675 = pneg %p224
        $region82: #{tpu_custom_call.1} parent=75 // pred_check_branch
          %677 = sbr.rel (%p675) target = $region84
        $region83: #{tpu_custom_call.1} parent=75 // pred_region
          %s678 = sand.u32 %s33, 1
          %s679 = scalar_lea.sflag [#allocation13], %s678
          %s680 = sand.u32 %s209, 1
          %s681 = smul.addr %s680, 4
          %s682 = scalar_lea.vmem [#allocation12], %s681
          %683 = dma.done %s679, 64
        $region84: #{tpu_custom_call.1} parent=75 // pred_fallthru
          _
        // Predicated region
        $region85: #{tpu_custom_call.1} parent=75 // pred_check
          %p684 = pneg %p252
        $region86: #{tpu_custom_call.1} parent=75 // pred_check_branch
          %686 = sbr.rel (%p684) target = $region88
        $region87: #{tpu_custom_call.1} parent=75 // pred_region
          %s687 = sand.u32 %s33, 1
          %s688 = scalar_lea.sflag [#allocation13], %s687
          %s689 = sand.u32 %s237, 1
          %s690 = smul.addr %s689, 4
          %s691 = scalar_lea.vmem [#allocation14], %s690
          %692 = dma.done %s688, 64
        $region88: #{tpu_custom_call.1} parent=75 // pred_fallthru
          _
      $region76: #{tpu_custom_call.1} parent=5 // pred_fallthru
        _
    $region6: #{tpu_custom_call.1} parent=1 // loop_footer
      %s31 = sadd.s32 1, %s27
    $region7: #{tpu_custom_call.1} parent=1 // loop_footer_branch
      %26 = sbr.rel target = $region3
    $region8: #{tpu_custom_call.1} parent=1 // loop_exit
      _
    %693 = vsyncpa [#allocation3], 1
    %s694 = scalar_lea.sflag [#allocation3], 1
    %695 = vsyncpa %s694, 1
    %696 = vsyncpa [#allocation6], 1
    %s697 = scalar_lea.sflag [#allocation6], 1
    %698 = vsyncpa %s697, 1
    %699 = vsyncpa [#allocation9], 1
    %700 = vsyncpa [#allocation4], 1
    %s701 = scalar_lea.sflag [#allocation4], 1
    %702 = vsyncpa %s701, 1
    %703 = vsyncpa [#allocation13], 1
    %s704 = scalar_lea.sflag [#allocation13], 1
    %705 = vsyncpa %s704, 1

</llo_original>
